<compile_context>
chip_gen: v5e
topology: v5e:2x2
jax: 0.10.0
libtpu: 0.0.40
codegen_flags: <defaults>
</compile_context>

<pallas_src>
import functools

import jax
import jax.numpy as jnp
from jax.experimental import pallas as pl
from jax.experimental.pallas import tpu as pltpu


def _round_up(n, m):
    return ((n + m - 1) // m) * m


def _cdiv(a, b):
    return (a + b - 1) // b


def _vmem_capacity_bytes():
    # Per-core VMEM: 128 MiB on v5e/v6e, 64 MiB on v7x.  Fall back to the
    # smallest (v7x) figure if the query is unavailable.
    try:
        return int(pltpu.get_tpu_info().vmem_capacity_bytes)
    except Exception:
        return 64 << 20


# ----------------------------------------------------------------------------
# Fused single-block path (whole array in VMEM, exact two-pass variance).
# The array may be lane-packed: (rows_p, pf = k*feat) with packed slot j
# holding original row (i*k + j) in columns [j*feat, (j+1)*feat).
# ----------------------------------------------------------------------------
def _fused_kernel(x_ref, o_ref, mean_ref, std_ref, *, k, feat, n_rows):
    x = x_ref[...].astype(jnp.float32)                 # (rows_p, pf)

    col_sum = jnp.sum(x, axis=0, keepdims=True)        # (1, pf)
    f_sum = col_sum[:, :feat]
    for j in range(1, k):                               # fold packed slots
        f_sum = f_sum + col_sum[:, j * feat:(j + 1) * feat]
    mean = f_sum / n_rows                               # (1, feat)
    mean_p = mean if k == 1 else jnp.concatenate([mean] * k, axis=1)

    d = x - mean_p
    col_sq = jnp.sum(d * d, axis=0, keepdims=True)      # (1, pf)
    f_sq = col_sq[:, :feat]
    for j in range(1, k):
        f_sq = f_sq + col_sq[:, j * feat:(j + 1) * feat]

    var = f_sq / (n_rows - 1.0)
    std = jnp.sqrt(var)
    inv = jnp.where(std > 0.0, 1.0 / std, 0.0)          # NaN->0 handling
    inv_p = inv if k == 1 else jnp.concatenate([inv] * k, axis=1)

    mean_ref[...] = mean
    std_ref[...] = std
    o_ref[...] = (d * inv_p).astype(o_ref.dtype)


# ----------------------------------------------------------------------------
# Streaming path, pass 1: shifted sum / sum-of-squares partials.
# Grid = (num_splits, tiles_per_split); split axis is "parallel" (2 TCs on
# v7x), tile axis is the serial reduction.  Partials stay 8-sublane wide.
# Tail rows (partial edge block / duplicated clamped steps) are masked to 0.
# ----------------------------------------------------------------------------
def _stats_kernel(shift_ref, x_ref, sum_ref, sq_ref, *,
                  tm, rows_p, tiles_per_split):
    s = pl.program_id(0)
    i = pl.program_id(1)

    @pl.when(i == 0)
    def _():
        sum_ref[...] = jnp.zeros_like(sum_ref)
        sq_ref[...] = jnp.zeros_like(sq_ref)

    t = s * tiles_per_split + i                    # logical (unclamped) tile idx
    x = x_ref[...].astype(jnp.float32)             # (tm, pf)
    pf = x.shape[-1]
    xp = x.reshape(tm // 8, 8, pf)                 # free sublane regrouping
    d = xp - shift_ref[...][None]                  # (tm//8, 8, pf)

    r_hi = jax.lax.broadcasted_iota(jnp.int32, (tm // 8, 8, pf), 0)
    r_lo = jax.lax.broadcasted_iota(jnp.int32, (tm // 8, 8, pf), 1)
    valid = (t * tm + r_hi * 8 + r_lo) < rows_p
    d = jnp.where(valid, d, 0.0)                   # mask tail / duplicate rows

    sum_ref[...] += jnp.sum(d, axis=0)[None]       # keep (1, 8, pf) partials
    sq_ref[...] += jnp.sum(d * d, axis=0)[None]


# ----------------------------------------------------------------------------
# Streaming path, pass 2: y = (x - mean) * inv_std (division hoisted out).
# Edge block is a partial block; out-of-range rows are simply not stored.
# ----------------------------------------------------------------------------
def _normalize_kernel(mean_ref, inv_ref, x_ref, o_ref, *, tm):
    x = x_ref[...].astype(jnp.float32)
    pf = x.shape[-1]
    xp = x.reshape(tm // 8, 8, pf)
    y = (xp - mean_ref[...][None]) * inv_ref[...][None]
    o_ref[...] = y.reshape(tm, pf).astype(o_ref.dtype)


def normalize_feat(x, *, tile_rows=None, force_two_pass=False,
                   fast_path_bytes=None, target_block_bytes=None):
    """JAX/Pallas equivalent of normalize_feat.forward for 2D/3D/4D inputs.

    Returns (normalized_x, means, stds) so `denorm` semantics remain possible.
    """
    orig_shape = x.shape
    feat = orig_shape[-1]
    x2 = x.reshape(-1, feat)          # leading-dim merge only: layout-preserving
    rows = x2.shape[0]
    itemsize = jnp.dtype(x.dtype).itemsize
    vmem_cap = _vmem_capacity_bytes()

    # Lane-pack narrow feature dims so the last (lane) dim is 128-wide.
    if feat < 128 and 128 % feat == 0 and rows % (128 // feat) == 0:
        k = 128 // feat
    else:
        # TODO(synk): extend lane packing to row counts not divisible by k
        # without a wrapper pad (needs in-kernel repacking or a BlockSpec-level
        # pack); ragged shapes currently run unpacked with masked edge blocks.
        k = 1
    pf = k * feat
    rows_p = rows // k
    pf_pad = _round_up(pf, 128)
    x2p = x2.reshape(rows_p, pf) if k > 1 else x2
    # TODO(synk): verify in HLO that the packing reshape above is a bitcast
    # (not a relayout copy); if a copy appears, pack via BlockSpec instead.

    # f32 VMEM footprint of the whole (lane-padded) tensor.
    footprint_f32 = _round_up(max(rows_p, 1), 8) * pf_pad * 4

    # ---------------- fused single-block fast path ---------------------------
    if fast_path_bytes is None:
        fast_path_bytes = vmem_cap // 6      # ~10 MiB on v7x, ~21 MiB on v5e/v6e
    if not force_two_pass and footprint_f32 <= fast_path_bytes:
        vmem_limit = int(min(int(vmem_cap * 0.85),
                             max(32 << 20, 6 * footprint_f32 + (4 << 20))))
        kern = functools.partial(_fused_kernel, k=k, feat=feat,
                                 n_rows=float(rows))
        y, mean, std = pl.pallas_call(
            kern,
            out_shape=(
                jax.ShapeDtypeStruct((rows_p, pf), x.dtype),
                jax.ShapeDtypeStruct((1, feat), jnp.float32),
                jax.ShapeDtypeStruct((1, feat), jnp.float32),
            ),
            grid=(1,),
            in_specs=[pl.BlockSpec((rows_p, pf), lambda i: (0, 0))],
            out_specs=(
                pl.BlockSpec((rows_p, pf), lambda i: (0, 0)),
                pl.BlockSpec((1, feat), lambda i: (0, 0)),
                pl.BlockSpec((1, feat), lambda i: (0, 0)),
            ),
            compiler_params=pltpu.CompilerParams(
                dimension_semantics=("arbitrary",),
                vmem_limit_bytes=vmem_limit,
            ),
        )(x2p)
        return (y.reshape(orig_shape),
                mean[0].astype(x.dtype), std[0].astype(x.dtype))

    # ---------------- streaming two-pass path --------------------------------
    sub = {1: 32, 2: 16}.get(itemsize, 8)    # dtype sublane tile (item 9)
    if target_block_bytes is None:
        target_block_bytes = vmem_cap // 10  # ~6.4 MiB v7x, ~12.8 MiB v5e/v6e
    if tile_rows is not None:
        tm = max(sub, (int(tile_rows) // sub) * sub)
    else:
        tm = max(sub, (target_block_bytes // (pf_pad * 4) // sub) * sub)
    # Budget ~8 f32 blocks (2x in, 2x out, f32 temporaries) under 85% of VMEM.
    tm_cap = max(sub, (int(vmem_cap * 0.85) // (8 * pf_pad * 4) // sub) * sub)
    tm = min(tm, tm_cap, _round_up(max(rows_p, 1), sub))
    block_f32 = tm * pf_pad * 4
    vmem_limit = int(min(int(vmem_cap * 0.85), max(32 << 20, 8 * block_f32)))

    n_tiles = _cdiv(rows_p, tm)
    # Split the serial reduction across a leading "parallel" axis so pass 1
    # can use both TensorCores on v7x (extra accumulator is negligible on
    # single-TC v5e/v6e).
    num_splits = 2 if n_tiles >= 2 else 1
    tiles_per_split = _cdiv(n_tiles, num_splits)
    last_tile = n_tiles - 1

    # Shift (first row) for numerically-stable shifted sums; pre-broadcast all
    # per-feature side inputs to (8, pf) so the sublane broadcast is free.
    shift_feat = x2[0].astype(jnp.float32)                         # (feat,)
    shift_p8 = jnp.broadcast_to(jnp.tile(shift_feat, k)[None], (8, pf))
    # TODO(synk): a per-split first-tile mean (Welford merge) would be more
    # robust than the row-0 shift if row 0 is an extreme outlier.

    stats_kern = functools.partial(_stats_kernel, tm=tm, rows_p=rows_p,
                                   tiles_per_split=tiles_per_split)
    sums, sqs = pl.pallas_call(
        stats_kern,
        out_shape=(
            jax.ShapeDtypeStruct((num_splits, 8, pf), jnp.float32),
            jax.ShapeDtypeStruct((num_splits, 8, pf), jnp.float32),
        ),
        grid=(num_splits, tiles_per_split),
        in_specs=[
            pl.BlockSpec((8, pf), lambda s, i: (0, 0)),
            # Clamp the block index for duplicated tail steps; their rows are
            # masked to zero inside the kernel, so no HBM OOB and no padding.
            pl.BlockSpec((tm, pf),
                         lambda s, i: (jnp.minimum(s * tiles_per_split + i,
                                                   last_tile), 0)),
        ],
        out_specs=(
            pl.BlockSpec((1, 8, pf), lambda s, i: (s, 0, 0)),
            pl.BlockSpec((1, 8, pf), lambda s, i: (s, 0, 0)),
        ),
        compiler_params=pltpu.CompilerParams(
            dimension_semantics=("parallel", "arbitrary"),
            vmem_limit_bytes=vmem_limit,
        ),
    )(shift_p8, x2p)

    # Tiny finalize in plain JAX: collapse (splits, 8 sublanes, k pack slots).
    d_sum = sums.reshape(num_splits, 8, k, feat).sum(axis=(0, 1, 2))
    d_sq = sqs.reshape(num_splits, 8, k, feat).sum(axis=(0, 1, 2))
    n = jnp.float32(rows)
    mean = shift_feat + d_sum / n
    var = jnp.maximum((d_sq - d_sum * d_sum / n) / (n - 1.0), 0.0)
    std = jnp.sqrt(var)
    inv_std = jnp.where(std > 0.0, 1.0 / std, 0.0)   # NaN handling hoisted here

    mean_p8 = jnp.broadcast_to(jnp.tile(mean, k)[None], (8, pf))
    inv_p8 = jnp.broadcast_to(jnp.tile(inv_std, k)[None], (8, pf))

    # --- pass 2: streaming normalize (partial edge block, no pad/slice) -----
    norm_kern = functools.partial(_normalize_kernel, tm=tm)
    y = pl.pallas_call(
        norm_kern,
        out_shape=jax.ShapeDtypeStruct((rows_p, pf), x.dtype),
        grid=(_cdiv(rows_p, tm),),
        in_specs=[
            pl.BlockSpec((8, pf), lambda i: (0, 0)),
            pl.BlockSpec((8, pf), lambda i: (0, 0)),
            pl.BlockSpec((tm, pf), lambda i: (i, 0)),
        ],
        out_specs=pl.BlockSpec((tm, pf), lambda i: (i, 0)),
        compiler_params=pltpu.CompilerParams(
            dimension_semantics=("parallel",),
            vmem_limit_bytes=vmem_limit,
        ),
    )(mean_p8, inv_p8, x2p)

    return (y.reshape(orig_shape),
            mean.astype(x.dtype), std.astype(x.dtype))


def _reference(x):
    feat = x.shape[-1]
    x2 = x.reshape(-1, feat).astype(jnp.float32)
    means = jnp.mean(x2, axis=0)
    stds = jnp.std(x2, axis=0, ddof=1)
    y = (x2 - means) / stds
    y = jnp.where(jnp.isnan(y), 0.0, y)
    return y.reshape(x.shape), means, stds


if __name__ == "__main__":
    key = jax.random.PRNGKey(0)
    k1, k2 = jax.random.split(key)

    # Case 1: 4D (B, T, N, F), feature 0 constant -> exercises std==0 path.
    x = jax.random.normal(k1, (2, 8, 16, 32), dtype=jnp.float32) * 3.0 + 1.5
    x = x.at[..., 0].set(2.0)
    y_ref, m_ref, s_ref = _reference(x)

    # 1a) fast (fused, lane-packed single-block) path.
    y, means, stds = normalize_feat(x)
    y = jax.block_until_ready(y)
    assert jnp.allclose(y, y_ref, atol=1e-4, rtol=1e-4)
    assert jnp.allclose(means, m_ref, atol=1e-4, rtol=1e-4)
    assert jnp.allclose(stds, s_ref, atol=1e-4, rtol=1e-4)

    # 1b) streaming path (lane-packed, 2-way split reduction, multi-tile).
    y2, means2, stds2 = normalize_feat(x, force_two_pass=True, tile_rows=16)
    y2 = jax.block_until_ready(y2)
    assert jnp.allclose(y2, y_ref, atol=1e-4, rtol=1e-4)
    assert jnp.allclose(means2, m_ref, atol=1e-4, rtol=1e-4)
    assert jnp.allclose(stds2, s_ref, atol=1e-4, rtol=1e-4)

    # Case 2: ragged row count (no lane packing, masked partial edge blocks,
    # no wrapper padding or output slice).
    x3 = jax.random.normal(k2, (3, 5, 7, 32), dtype=jnp.float32) * 2.0 - 0.7
    y3_ref, m3_ref, s3_ref = _reference(x3)
    y3, means3, stds3 = normalize_feat(x3, force_two_pass=True, tile_rows=16)
    y3 = jax.block_until_ready(y3)
    assert jnp.allclose(y3, y3_ref, atol=1e-4, rtol=1e-4)
    assert jnp.allclose(means3, m3_ref, atol=1e-4, rtol=1e-4)
    assert jnp.allclose(stds3, s3_ref, atol=1e-4, rtol=1e-4)

    # TODO(synk): the torch module's `.to(device)` transfer and stateful
    # self.means/self.stds attributes have no kernel equivalent; stats are
    # returned to the caller instead.
    print("KERNEL_OK")
</pallas_src>

<mosaic_0001>
module attributes {stable_mosaic.version = 11 : i64} {
  func.func @_fused_kernel(%arg0: i32, %arg1: memref<64x128xf32, #tpu.memory_space<vmem>>, %arg2: memref<64x128xf32, #tpu.memory_space<vmem>>, %arg3: memref<1x32xf32, #tpu.memory_space<vmem>>, %arg4: memref<1x32xf32, #tpu.memory_space<vmem>>) attributes {dimension_semantics = [#tpu.dimension_semantics<arbitrary>], iteration_bounds = array<i64: 1>, scalar_prefetch = 0 : i64, scratch_operands = 0 : i64, tpu.core_type = #tpu.core_type<tc>, window_params = [{pipeline_mode = #tpu.pipeline_mode<synchronous>, transform_indices = @transform_0, window_bounds = array<i64: 64, 128>}, {pipeline_mode = #tpu.pipeline_mode<synchronous>, transform_indices = @transform_1, window_bounds = array<i64: 64, 128>}, {pipeline_mode = #tpu.pipeline_mode<synchronous>, transform_indices = @transform_2, window_bounds = array<i64: 1, 32>}, {pipeline_mode = #tpu.pipeline_mode<synchronous>, transform_indices = @transform_3, window_bounds = array<i64: 1, 32>}]} {
    %c0 = arith.constant 0 : index
    %c0_0 = arith.constant 0 : index
    %0 = vector.load %arg1[%c0, %c0_0] : memref<64x128xf32, #tpu.memory_space<vmem>>, vector<64x128xf32>
    %cst = arith.constant dense<0.000000e+00> : vector<128xf32>
    %1 = vector.multi_reduction <add>, %0, %cst [0] : vector<64x128xf32> to vector<128xf32>
    %2 = vector.shape_cast %1 : vector<128xf32> to vector<1x128xf32>
    %3 = vector.extract_strided_slice %2 {offsets = [0, 0], sizes = [1, 32], strides = [1, 1]} : vector<1x128xf32> to vector<1x32xf32>
    %4 = vector.extract_strided_slice %2 {offsets = [0, 32], sizes = [1, 32], strides = [1, 1]} : vector<1x128xf32> to vector<1x32xf32>
    %5 = arith.addf %3, %4 : vector<1x32xf32>
    %6 = vector.extract_strided_slice %2 {offsets = [0, 64], sizes = [1, 32], strides = [1, 1]} : vector<1x128xf32> to vector<1x32xf32>
    %7 = arith.addf %5, %6 : vector<1x32xf32>
    %8 = vector.extract_strided_slice %2 {offsets = [0, 96], sizes = [1, 32], strides = [1, 1]} : vector<1x128xf32> to vector<1x32xf32>
    %9 = arith.addf %7, %8 : vector<1x32xf32>
    %cst_1 = arith.constant 2.560000e+02 : f32
    %10 = vector.broadcast %cst_1 : f32 to vector<1x32xf32>
    %11 = arith.divf %9, %10 : vector<1x32xf32>
    %12 = tpu.concatenate %11, %11, %11, %11 in 1 : vector<1x32xf32>, vector<1x32xf32>, vector<1x32xf32>, vector<1x32xf32> -> vector<1x128xf32>
    %13 = vector.broadcast %12 : vector<1x128xf32> to vector<64x128xf32>
    %14 = arith.subf %0, %13 : vector<64x128xf32>
    %15 = arith.mulf %14, %14 : vector<64x128xf32>
    %cst_2 = arith.constant dense<0.000000e+00> : vector<128xf32>
    %16 = vector.multi_reduction <add>, %15, %cst_2 [0] : vector<64x128xf32> to vector<128xf32>
    %17 = vector.shape_cast %16 : vector<128xf32> to vector<1x128xf32>
    %18 = vector.extract_strided_slice %17 {offsets = [0, 0], sizes = [1, 32], strides = [1, 1]} : vector<1x128xf32> to vector<1x32xf32>
    %19 = vector.extract_strided_slice %17 {offsets = [0, 32], sizes = [1, 32], strides = [1, 1]} : vector<1x128xf32> to vector<1x32xf32>
    %20 = arith.addf %18, %19 : vector<1x32xf32>
    %21 = vector.extract_strided_slice %17 {offsets = [0, 64], sizes = [1, 32], strides = [1, 1]} : vector<1x128xf32> to vector<1x32xf32>
    %22 = arith.addf %20, %21 : vector<1x32xf32>
    %23 = vector.extract_strided_slice %17 {offsets = [0, 96], sizes = [1, 32], strides = [1, 1]} : vector<1x128xf32> to vector<1x32xf32>
    %24 = arith.addf %22, %23 : vector<1x32xf32>
    %cst_3 = arith.constant 2.550000e+02 : f32
    %25 = vector.broadcast %cst_3 : f32 to vector<1x32xf32>
    %26 = arith.divf %24, %25 : vector<1x32xf32>
    %27 = math.sqrt %26 : vector<1x32xf32>
    %cst_4 = arith.constant 0.000000e+00 : f32
    %28 = vector.broadcast %cst_4 : f32 to vector<1x32xf32>
    %29 = arith.cmpf ogt, %27, %28 : vector<1x32xf32>
    %cst_5 = arith.constant 1.000000e+00 : f32
    %30 = vector.broadcast %cst_5 : f32 to vector<1x32xf32>
    %31 = arith.divf %30, %27 : vector<1x32xf32>
    %cst_6 = arith.constant 0.000000e+00 : f32
    %32 = vector.broadcast %cst_6 : f32 to vector<1x32xf32>
    %33 = arith.select %29, %31, %32 : vector<1x32xi1>, vector<1x32xf32>
    %34 = tpu.concatenate %33, %33, %33, %33 in 1 : vector<1x32xf32>, vector<1x32xf32>, vector<1x32xf32>, vector<1x32xf32> -> vector<1x128xf32>
    %c0_7 = arith.constant 0 : index
    %c0_8 = arith.constant 0 : index
    %35 = vector.load %arg3[%c0_7, %c0_8] : memref<1x32xf32, #tpu.memory_space<vmem>>, vector<1x32xf32>
    tpu.vector_store %arg3[%c0_7, %c0_8], %11 {strides = array<i32>} : memref<1x32xf32, #tpu.memory_space<vmem>>, vector<1x32xf32>,
    %c0_9 = arith.constant 0 : index
    %c0_10 = arith.constant 0 : index
    %36 = vector.load %arg4[%c0_9, %c0_10] : memref<1x32xf32, #tpu.memory_space<vmem>>, vector<1x32xf32>
    tpu.vector_store %arg4[%c0_9, %c0_10], %27 {strides = array<i32>} : memref<1x32xf32, #tpu.memory_space<vmem>>, vector<1x32xf32>,
    %37 = vector.broadcast %34 : vector<1x128xf32> to vector<64x128xf32>
    %38 = arith.mulf %14, %37 : vector<64x128xf32>
    %c0_11 = arith.constant 0 : index
    %c0_12 = arith.constant 0 : index
    %39 = vector.load %arg2[%c0_11, %c0_12] : memref<64x128xf32, #tpu.memory_space<vmem>>, vector<64x128xf32>
    tpu.vector_store %arg2[%c0_11, %c0_12], %38 {strides = array<i32>} : memref<64x128xf32, #tpu.memory_space<vmem>>, vector<64x128xf32>,
    return
  }
  func.func @transform_0(%arg0: i32) -> (i32, i32) {
    %c0_i32 = arith.constant 0 : i32
    %c0_i32_0 = arith.constant 0 : i32
    %c0_i32_1 = arith.constant 0 : i32
    return %c0_i32, %c0_i32_0 : i32, i32
  }
  func.func @transform_1(%arg0: i32) -> (i32, i32) {
    %c0_i32 = arith.constant 0 : i32
    %c0_i32_0 = arith.constant 0 : i32
    %c0_i32_1 = arith.constant 0 : i32
    return %c0_i32, %c0_i32_0 : i32, i32
  }
  func.func @transform_2(%arg0: i32) -> (i32, i32) {
    %c0_i32 = arith.constant 0 : i32
    %c0_i32_0 = arith.constant 0 : i32
    %c0_i32_1 = arith.constant 0 : i32
    return %c0_i32, %c0_i32_0 : i32, i32
  }
  func.func @transform_3(%arg0: i32) -> (i32, i32) {
    %c0_i32 = arith.constant 0 : i32
    %c0_i32_0 = arith.constant 0 : i32
    %c0_i32_1 = arith.constant 0 : i32
    return %c0_i32, %c0_i32_0 : i32, i32
  }
}

</mosaic_0001>

<llo_original>
// kernel: tpu_custom_call.1
$region0: #{tpu_custom_call.1}
  #allocation0 [shape = 'u32[]', space=smem, size = 0x4, offset = 0x4, fixed_abs, tag = 'smem constant byte address 0x4 - core index']
  #allocation1 [shape = 'u32[72,128]{1,0:T(1,128)}', space=vmem, size = 0x9000, scoped, tag = 'internal scratch']
  %s0 = inlined_call_operand.hbm [shape: f32[64,128], index: 0, kind: input, shape index: {}]
  %s1 = inlined_call_operand.hbm [shape: f32[64,128], index: 1, kind: output, shape index: {0}]
  %s2 = inlined_call_operand.hbm [shape: f32[1,32], index: 2, kind: output, shape index: {1}]
  %s3 = inlined_call_operand.hbm [shape: f32[1,32], index: 3, kind: output, shape index: {2}]
  %4 = xla_tuple %s1, %s2, %s3
  %s5 = sld [smem:[#allocation0]]
  $region34: #{tpu_custom_call.1} parent=0
    _
  %s7 = ssub.s32 1, %s5
  %s8 = scalar_select 0, %s7, %s5
  $region1: #{tpu_custom_call.1} parent=0
    #allocation2 [shape = 'u8[32768]{0}', space=vmem, size = 0x8000, scoped, tag = 'input window, operand 0, single buffered']
    #allocation3 [shape = 's32[1]{0}', space=sflag, size = 0x4, scoped, tag = 'scoped memory for tpu_custom_call.1']
    #allocation4 [shape = 's32[1]{0}', space=sflag, size = 0x4, scoped, tag = 'scoped memory for tpu_custom_call.1']
    #allocation5 [shape = 'u8[32768]{0}', space=vmem, size = 0x8000, scoped, tag = 'output window, operand 0, single buffered']
    #allocation6 [shape = 'u8[512]{0}', space=vmem, size = 0x400, scoped, tag = 'output window, operand 1, single buffered']
    #allocation7 [shape = 's32[1]{0}', space=sflag, size = 0x4, scoped, tag = 'scoped memory for tpu_custom_call.1']
    #allocation8 [shape = 'u8[512]{0}', space=vmem, size = 0x400, scoped, tag = 'output window, operand 2, single buffered']
    %9 = vsyncpa [#allocation3], 0
    %10 = vsyncpa [#allocation4], 0
    %11 = vsyncpa [#allocation7], 0
    // Predicated region
    $region2: #{tpu_custom_call.1} parent=1 // pred_check
      _
    $region3: #{tpu_custom_call.1} parent=1 // pred_check_branch
      %13 = sbr.rel (0) target = $region5
    $region4: #{tpu_custom_call.1} parent=1 // pred_region
      %15 = vsyncadd [#allocation3], 0
      %s16 = sshll.u32 %s0, 4
      %s17 = int_to_ptr.hbm [resolvable:$true] %s16
      %s18 = sshll.u32 [#allocation2], 4
      %s19 = int_to_ptr.vmem [resolvable:$true] %s18
      %24 = dma.hbm_to_vmem [thread:$0]  %s17, 1024, %s19, [#allocation3], 128, 128, 8
    $region5: #{tpu_custom_call.1} parent=1 // pred_fallthru
      _
    // Predicated region
    $region6: #{tpu_custom_call.1} parent=1 // pred_check
      _
    $region7: #{tpu_custom_call.1} parent=1 // pred_check_branch
      %26 = sbr.rel (0) target = $region9
    $region8: #{tpu_custom_call.1} parent=1 // pred_region
      %28 = dma.done [#allocation3], 1024
    $region9: #{tpu_custom_call.1} parent=1 // pred_fallthru
      _
    %v29 = vld [vmem:[#allocation2] sm:$0xff]
    %v30 = vld [vmem:[#allocation2 + $0x8] sm:$0xff]
    %v31 = vld [vmem:[#allocation2 + $0x10] sm:$0xff]
    %v32 = vld [vmem:[#allocation2 + $0x18] sm:$0xff]
    %v33 = vld [vmem:[#allocation2 + $0x20] sm:$0xff]
    %v34 = vld [vmem:[#allocation2 + $0x28] sm:$0xff]
    %v35 = vld [vmem:[#allocation2 + $0x30] sm:$0xff]
    %v36 = vld [vmem:[#allocation2 + $0x38] sm:$0xff]
    %v37 = vadd.f32 %v29, %v30
    %v38 = vadd.f32 %v37, %v31
    %v39 = vadd.f32 %v38, %v32
    %v40 = vadd.f32 %v39, %v33
    %v41 = vadd.f32 %v40, %v34
    %v42 = vadd.f32 %v41, %v35
    %v43 = vadd.f32 %v42, %v36
    %v44 = vrot.slane %v43, 4
    %v45 = vadd.f32 %v43, %v44
    %v46 = vrot.slane %v45, 2
    %v47 = vadd.f32 %v45, %v46
    %v48 = vrot.slane %v47, 1
    %v49 = vadd.f32 %v47, %v48
    %51 = vrot.lane.b32.xlu0 %v49, 96
    %v52 = vpop.permute.xlu0 %51
    %v54 = vadd.f32 %v49, %v52
    %55 = vrot.lane.b32.xlu0 %v49, 64
    %v56 = vpop.permute.xlu0 %55
    %v58 = vadd.f32 %v54, %v56
    %59 = vrot.lane.b32.xlu0 %v49, 32
    %v60 = vpop.permute.xlu0 %59
    %v62 = vadd.f32 %v58, %v60
    %v63 = vrcp.pop 256.0
    %v64 = vmul.f32 256.0, %v63
    %v65 = vsub.f32 1.0, %v64
    %v66 = vmul.f32 %v63, %v65
    %v67 = vadd.f32 %v63, %v66
    %vm68 = vweird.f32 %v63
    %v69 = vsel %vm68, %v63, %v67
    %v70 = vmul.f32 %v62, %v69
    %72 = vrot.lane.b32.xlu0 %v70, 32
    %v73 = vpop.permute.xlu0 %72
    %75 = vrot.lane.b32.xlu0 %v70, 64
    %v76 = vpop.permute.xlu0 %75
    %78 = vrot.lane.b32.xlu0 %v70, 96
    %v79 = vpop.permute.xlu0 %78
    %vm81 = vcmask 261120
    %v82 = vsel %vm81, %v70, %v73
    %vm83 = vcmask 523264
    %v84 = vsel %vm83, %v82, %v76
    %vm85 = vcmask 785408
    %v86 = vsel %vm85, %v84, %v79
    %v87 = vperm.slane %v86, 0
    %v88 = vsub.f32 %v29, %v87
    %v89 = vsub.f32 %v30, %v87
    %v90 = vsub.f32 %v31, %v87
    %v91 = vsub.f32 %v32, %v87
    %v92 = vsub.f32 %v33, %v87
    %v93 = vsub.f32 %v34, %v87
    %v94 = vsub.f32 %v35, %v87
    %v95 = vsub.f32 %v36, %v87
    %v96 = vmul.f32 %v88, %v88
    %v97 = vmul.f32 %v89, %v89
    %v98 = vmul.f32 %v90, %v90
    %v99 = vmul.f32 %v91, %v91
    %v100 = vmul.f32 %v92, %v92
    %v101 = vmul.f32 %v93, %v93
    %v102 = vmul.f32 %v94, %v94
    %v103 = vmul.f32 %v95, %v95
    %v104 = vadd.f32 %v96, %v97
    %v105 = vadd.f32 %v104, %v98
    %v106 = vadd.f32 %v105, %v99
    %v107 = vadd.f32 %v106, %v100
    %v108 = vadd.f32 %v107, %v101
    %v109 = vadd.f32 %v108, %v102
    %v110 = vadd.f32 %v109, %v103
    %v111 = vrot.slane %v110, 4
    %v112 = vadd.f32 %v110, %v111
    %v113 = vrot.slane %v112, 2
    %v114 = vadd.f32 %v112, %v113
    %v115 = vrot.slane %v114, 1
    %v116 = vadd.f32 %v114, %v115
    %118 = vrot.lane.b32.xlu0 %v116, 96
    %v119 = vpop.permute.xlu0 %118
    %v121 = vadd.f32 %v116, %v119
    %122 = vrot.lane.b32.xlu0 %v116, 64
    %v123 = vpop.permute.xlu0 %122
    %v125 = vadd.f32 %v121, %v123
    %126 = vrot.lane.b32.xlu0 %v116, 32
    %v127 = vpop.permute.xlu0 %126
    %v129 = vadd.f32 %v125, %v127
    %v130 = vrcp.pop 255.0
    %v131 = vmul.f32 255.0, %v130
    %v132 = vsub.f32 1.0, %v131
    %v133 = vmul.f32 %v130, %v132
    %v134 = vadd.f32 %v130, %v133
    %vm135 = vweird.f32 %v130
    %v136 = vsel %vm135, %v130, %v134
    %v137 = vmul.f32 %v129, %v136
    %v138 = vrsqrt.pop %v137
    %v139 = vmul.f32 %v138, %v137
    %v140 = vmul.f32 %v139, %v138
    %v141 = vmul.f32 0.5, %v140
    %v142 = vsub.f32 1.5, %v141
    %v143 = vmul.f32 %v138, %v142
    %v144 = vmul.f32 %v137, %v143
    %vm145 = vcmp.eq.f32.partialorder %v137, inf
    %v146 = vsel %vm145, %v137, %v144
    %vm147 = vcmp.eq.f32.partialorder %v137, 0.0
    %v148 = vand.u32 %v137, 2147483648
    %v149 = vsel %vm147, %v148, %v146
    %vm150 = vcmp.gt.f32.partialorder %v149, 0.0
    %v151 = vrcp.pop %v149
    %v152 = vmul.f32 %v149, %v151
    %v153 = vsub.f32 1.0, %v152
    %v154 = vmul.f32 %v151, %v153
    %v155 = vadd.f32 %v151, %v154
    %vm156 = vweird.f32 %v149
    %vm157 = vweird.f32 %v151
    %vm158 = vmor %vm156, %vm157
    %v159 = vsel %vm158, %v151, %v155
    %v160 = vand.u32 2147483647, %v149
    %vm161 = vcmp.eq.f32.partialorder %v160, 8.507059e+37
    %v162 = vand.u32 %v149, 2147483648
    %v163 = vor.u32 1.1754944e-38, %v162
    %v164 = vsel %vm161, %v163, %v159
    %v165 = vmul.f32 1.0, %v164
    %v166 = vsel %vm150, %v165, 0.0
    %168 = vrot.lane.b32.xlu0 %v166, 32
    %v169 = vpop.permute.xlu0 %168
    %171 = vrot.lane.b32.xlu0 %v166, 64
    %v172 = vpop.permute.xlu0 %171
    %174 = vrot.lane.b32.xlu0 %v166, 96
    %v175 = vpop.permute.xlu0 %174
    %v177 = vsel %vm81, %v166, %v169
    %v178 = vsel %vm83, %v177, %v172
    %v179 = vsel %vm85, %v178, %v175
    %vm180 = vcmask 253952
    %181 = vst.msk [vmem:[#allocation6] sm:$0x1] %vm180, %v70
    %182 = vst.msk [vmem:[#allocation8] sm:$0x1] %vm180, %v149
    %v183 = vperm.slane %v179, 0
    %v184 = vmul.f32 %v88, %v183
    %v185 = vmul.f32 %v89, %v183
    %v186 = vmul.f32 %v90, %v183
    %v187 = vmul.f32 %v91, %v183
    %v188 = vmul.f32 %v92, %v183
    %v189 = vmul.f32 %v93, %v183
    %v190 = vmul.f32 %v94, %v183
    %v191 = vmul.f32 %v95, %v183
    %192 = vst [vmem:[#allocation5] sm:$0xff] %v184
    %193 = vst [vmem:[#allocation5 + $0x8] sm:$0xff] %v185
    %194 = vst [vmem:[#allocation5 + $0x10] sm:$0xff] %v186
    %195 = vst [vmem:[#allocation5 + $0x18] sm:$0xff] %v187
    %196 = vst [vmem:[#allocation5 + $0x20] sm:$0xff] %v188
    %197 = vst [vmem:[#allocation5 + $0x28] sm:$0xff] %v189
    %198 = vst [vmem:[#allocation5 + $0x30] sm:$0xff] %v190
    %199 = vst [vmem:[#allocation5 + $0x38] sm:$0xff] %v191
    // Predicated region
    $region10: #{tpu_custom_call.1} parent=1 // pred_check
      _
    $region11: #{tpu_custom_call.1} parent=1 // pred_check_branch
      %201 = sbr.rel (0) target = $region13
    $region12: #{tpu_custom_call.1} parent=1 // pred_region
      %203 = vsyncadd [#allocation4], 0
      %s204 = sshll.u32 [#allocation5], 4
      %s205 = int_to_ptr.vmem [resolvable:$true] %s204
      %s206 = sshll.u32 %s1, 4
      %s207 = int_to_ptr.hbm [resolvable:$true] %s206
      %212 = dma.vmem_to_hbm [thread:$0]  %s205, 1024, %s207, [#allocation4], 128, 128, 8
    $region13: #{tpu_custom_call.1} parent=1 // pred_fallthru
      _
    // Predicated region
    $region14: #{tpu_custom_call.1} parent=1 // pred_check
      _
    $region15: #{tpu_custom_call.1} parent=1 // pred_check_branch
      %214 = sbr.rel (0) target = $region17
    $region16: #{tpu_custom_call.1} parent=1 // pred_region
      %216 = vsyncadd [#allocation7], 0
      %s218 = sshll.u32 [#allocation6], 4
      %s219 = int_to_ptr.vmem [resolvable:$true] %s218
      %s220 = sshll.u32 %s2, 4
      %s221 = int_to_ptr.hbm [resolvable:$true] %s220
      %223 = dma.vmem_to_hbm [thread:$0]  %s219, 16, %s221, [#allocation7]
    $region17: #{tpu_custom_call.1} parent=1 // pred_fallthru
      _
    // Predicated region
    $region18: #{tpu_custom_call.1} parent=1 // pred_check
      _
    $region19: #{tpu_custom_call.1} parent=1 // pred_check_branch
      %225 = sbr.rel (0) target = $region21
    $region20: #{tpu_custom_call.1} parent=1 // pred_region
      %227 = vsyncadd [#allocation7], 0
      %s229 = sshll.u32 [#allocation8], 4
      %s230 = int_to_ptr.vmem [resolvable:$true] %s229
      %s231 = sshll.u32 %s3, 4
      %s232 = int_to_ptr.hbm [resolvable:$true] %s231
      %234 = dma.vmem_to_hbm [thread:$0]  %s230, 16, %s232, [#allocation7]
    $region21: #{tpu_custom_call.1} parent=1 // pred_fallthru
      _
    // Predicated region
    $region22: #{tpu_custom_call.1} parent=1 // pred_check
      _
    $region23: #{tpu_custom_call.1} parent=1 // pred_check_branch
      %236 = sbr.rel (0) target = $region25
    $region24: #{tpu_custom_call.1} parent=1 // pred_region
      %238 = dma.done [#allocation4], 1024
    $region25: #{tpu_custom_call.1} parent=1 // pred_fallthru
      _
    // Predicated region
    $region26: #{tpu_custom_call.1} parent=1 // pred_check
      _
    $region27: #{tpu_custom_call.1} parent=1 // pred_check_branch
      %240 = sbr.rel (0) target = $region29
    $region28: #{tpu_custom_call.1} parent=1 // pred_region
      %242 = dma.done [#allocation7], 16
    $region29: #{tpu_custom_call.1} parent=1 // pred_fallthru
      _
    // Predicated region
    $region30: #{tpu_custom_call.1} parent=1 // pred_check
      _
    $region31: #{tpu_custom_call.1} parent=1 // pred_check_branch
      %244 = sbr.rel (0) target = $region33
    $region32: #{tpu_custom_call.1} parent=1 // pred_region
      %246 = dma.done [#allocation7], 16
    $region33: #{tpu_custom_call.1} parent=1 // pred_fallthru
      _
    %247 = vsyncpa [#allocation3], 1
    %248 = vsyncpa [#allocation4], 1
    %249 = vsyncpa [#allocation7], 1

</llo_original>
